<compile_context>
chip_gen: v6e
topology: v6e:2x2x1
jax: 0.10.0
libtpu: 0.0.40
codegen_flags: <defaults>
</compile_context>

<pallas_src>
import functools

import jax
import jax.numpy as jnp
from jax import lax
from jax.experimental import pallas as pl
from jax.experimental.pallas import tpu as pltpu


def _contrastive_loss_kernel(b_valid, t_ref, s_ref, lrow_ref, lcol_ref,
                             out_ref, neg_acc, pos_buf):
    i = pl.program_id(0)          # row block of the similarity matrix (parallel)
    j = pl.program_id(1)          # column block (reduction axis, arbitrary)
    nj = pl.num_programs(1)

    @pl.when(j == 0)
    def _():
        neg_acc[...] = jnp.zeros_like(neg_acc)

    # Row-normalise both tiles: fold the cosine denominator into the operands.
    # eps mirrors torch cosine_similarity (1 / max(||x||, 1e-8) per operand).
    t = t_ref[...].astype(jnp.float32)                                   # (tB, D)
    s = s_ref[...].astype(jnp.float32)                                   # (tB, D)
    t_hat = t * lax.rsqrt(jnp.maximum(jnp.sum(t * t, axis=1, keepdims=True), 1e-16))
    s_hat = s * lax.rsqrt(jnp.maximum(jnp.sum(s * s, axis=1, keepdims=True), 1e-16))

    # Pairwise cosine block on the MXU: native-dtype operands, f32 accumulation.
    dn = (((1,), (1,)), ((), ()))
    sim = lax.dot_general(t_hat.astype(t_ref.dtype), s_hat.astype(s_ref.dtype),
                          dn, preferred_element_type=jnp.float32)        # (tB, tB)
    exp_sim = jnp.exp(sim)

    # Negative mask: labels differ AND the column is a real (non-padded) sample.
    lrow = lrow_ref[...]                                                 # (tB, 1) int32
    lcol = lcol_ref[...]                                                 # (1, tB) int32
    tbc = lcol.shape[1]
    col_idx = j * tbc + lax.broadcasted_iota(jnp.int32, (1, tbc), 1)
    neg_mask = jnp.logical_and(lrow != lcol, col_idx < b_valid)
    neg_acc[...] += jnp.sum(jnp.where(neg_mask, exp_sim, 0.0),
                            axis=1, keepdims=True)

    # Positive term exists only on the diagonal block: cos(t_i, s_i) as a row-wise
    # reduce of the matching rows (no diagonal extraction from sim).
    @pl.when(j == i)
    def _():
        pos_buf[...] = jnp.sum(t_hat * s_hat, axis=1, keepdims=True)

    # Epilogue: per-row contribution log(exp(pos)/neg) = pos - log(neg).
    # NOTE: if a row has no differently-labelled sample, neg == 0 -> +inf,
    # identical to the PyTorch reference behaviour (no extra guard added).
    @pl.when(j == nj - 1)
    def _():
        out_ref[...] = pos_buf[...] - jnp.log(neg_acc[...])


def _round_up(x, m):
    return ((x + m - 1) // m) * m


def contrastive_loss(emb_T, emb_S, labels, *, block_b=256):
    """emb_T, emb_S: (B, D) float (f32 or bf16); labels: (B,) int. Returns scalar f32 loss.

    block_b: row/col tile of the similarity matrix. Use 256 on v6e/v7x, 128 on v5e.
    """
    assert block_b % 128 == 0, "block_b must be a multiple of 128"
    B, D = emb_T.shape

    if B <= block_b:
        tB = _round_up(max(B, 8), 8)          # single block per axis
    else:
        tB = block_b
    B_pad = _round_up(B, tB)
    n_blk = B_pad // tB

    pad_rows = B_pad - B
    if pad_rows:
        emb_T = jnp.pad(emb_T, ((0, pad_rows), (0, 0)))
        emb_S = jnp.pad(emb_S, ((0, pad_rows), (0, 0)))
        labels = jnp.pad(labels, (0, pad_rows))
    lrow = labels.astype(jnp.int32).reshape(B_pad, 1)
    lcol = labels.astype(jnp.int32).reshape(1, B_pad)

    itemsize = jnp.dtype(emb_T.dtype).itemsize
    cost = pl.CostEstimate(
        flops=2 * B_pad * B_pad * D,
        transcendentals=B_pad * B_pad + 3 * B_pad,
        bytes_accessed=2 * B_pad * D * itemsize + 3 * B_pad * 4,
    )

    per_row = pl.pallas_call(
        functools.partial(_contrastive_loss_kernel, B),
        out_shape=jax.ShapeDtypeStruct((B_pad, 1), jnp.float32),
        grid_spec=pltpu.PrefetchScalarGridSpec(
            num_scalar_prefetch=0,
            grid=(n_blk, n_blk),
            in_specs=[
                pl.BlockSpec((tB, D), lambda i, j: (i, 0)),   # teacher rows (row block)
                pl.BlockSpec((tB, D), lambda i, j: (j, 0)),   # student rows (col block)
                pl.BlockSpec((tB, 1), lambda i, j: (i, 0)),   # row-block labels
                pl.BlockSpec((1, tB), lambda i, j: (0, j)),   # col-block labels
            ],
            out_specs=pl.BlockSpec((tB, 1), lambda i, j: (i, 0)),
            scratch_shapes=[
                pltpu.VMEM((tB, 1), jnp.float32),   # running per-row negative sum
                pltpu.VMEM((tB, 1), jnp.float32),   # stashed positive cosine sims
            ],
        ),
        compiler_params=pltpu.CompilerParams(
            dimension_semantics=("parallel", "arbitrary")),
        cost_estimate=cost,
    )(emb_T, emb_S, lrow, lcol)

    # Tiny final reduction (drops padded rows) outside the kernel.
    return -jnp.sum(per_row[:B, 0]) / B


def contrastive_loss_ref(emb_T, emb_S, labels):
    """Plain-JAX reference replicating the PyTorch forward pass."""
    t = emb_T.astype(jnp.float32)
    s = emb_S.astype(jnp.float32)
    dots = t @ s.T
    tn = jnp.linalg.norm(t, axis=1, keepdims=True)
    sn = jnp.linalg.norm(s, axis=1, keepdims=True)
    sim = dots / jnp.maximum(tn * sn.T, 1e-8)
    pos = jnp.exp(jnp.diagonal(sim))
    mask = labels[:, None] != labels[None, :]
    neg = jnp.sum(jnp.where(mask, jnp.exp(sim), 0.0), axis=1)
    return -jnp.sum(jnp.log(pos / neg)) / labels.shape[0]


if __name__ == "__main__":
    key = jax.random.PRNGKey(0)

    # Small case (single block, block shapes == full array dims).
    B, D = 8, 32
    k_t, k_s, k_t2, k_s2 = jax.random.split(key, 4)
    emb_T = jax.random.normal(k_t, (B, D), dtype=jnp.float32)
    emb_S = jax.random.normal(k_s, (B, D), dtype=jnp.float32)
    labels = jnp.array([0, 1, 0, 1, 2, 2, 3, 0], dtype=jnp.int32)

    loss = jax.block_until_ready(contrastive_loss(emb_T, emb_S, labels))
    ref = jax.block_until_ready(contrastive_loss_ref(emb_T, emb_S, labels))
    assert jnp.isfinite(loss), "loss is not finite"
    assert jnp.allclose(loss, ref, rtol=1e-5, atol=1e-5), (loss, ref)

    # Larger case exercising the tiled (multi-block) + row/col-padding path.
    B2, D2 = 160, 32
    emb_T2 = jax.random.normal(k_t2, (B2, D2), dtype=jnp.float32)
    emb_S2 = jax.random.normal(k_s2, (B2, D2), dtype=jnp.float32)
    labels2 = (jnp.arange(B2, dtype=jnp.int32) % 5)

    loss2 = jax.block_until_ready(
        contrastive_loss(emb_T2, emb_S2, labels2, block_b=128))
    ref2 = jax.block_until_ready(contrastive_loss_ref(emb_T2, emb_S2, labels2))
    assert jnp.isfinite(loss2), "tiled loss is not finite"
    assert jnp.allclose(loss2, ref2, rtol=1e-5, atol=1e-5), (loss2, ref2)

    print("KERNEL_OK")
</pallas_src>

<mosaic_0001>
module attributes {stable_mosaic.version = 11 : i64} {
  func.func @_contrastive_loss_kernel(%arg0: i32, %arg1: i32, %arg2: memref<8x32xf32, #tpu.memory_space<vmem>>, %arg3: memref<8x32xf32, #tpu.memory_space<vmem>>, %arg4: memref<8x1xi32, #tpu.memory_space<vmem>>, %arg5: memref<1x8xi32, #tpu.memory_space<vmem>>, %arg6: memref<8x1xf32, #tpu.memory_space<vmem>>, %arg7: memref<8x1xf32, #tpu.memory_space<vmem>>, %arg8: memref<8x1xf32, #tpu.memory_space<vmem>>) attributes {dimension_semantics = [#tpu.dimension_semantics<parallel>, #tpu.dimension_semantics<arbitrary>], iteration_bounds = array<i64: 1, 1>, scalar_prefetch = 0 : i64, scratch_operands = 2 : i64, tpu.core_type = #tpu.core_type<tc>, window_params = [{transform_indices = @transform_0, window_bounds = array<i64: 8, 32>}, {transform_indices = @transform_1, window_bounds = array<i64: 8, 32>}, {transform_indices = @transform_2, window_bounds = array<i64: 8, 1>}, {transform_indices = @transform_3, window_bounds = array<i64: 1, 8>}, {transform_indices = @transform_4, window_bounds = array<i64: 8, 1>}]} {
    %c0_i32 = arith.constant 0 : i32
    %0 = arith.cmpi eq, %arg1, %c0_i32 : i32
    %1 = arith.extui %0 : i1 to i32
    %c0_i32_0 = arith.constant 0 : i32
    %2 = arith.cmpi ne, %1, %c0_i32_0 : i32
    scf.if %2 {
      %cst_22 = arith.constant 0.000000e+00 : f32
      %49 = vector.broadcast %cst_22 : f32 to vector<8x1xf32>
      %c0_23 = arith.constant 0 : index
      %c0_24 = arith.constant 0 : index
      %50 = vector.load %arg7[%c0_23, %c0_24] : memref<8x1xf32, #tpu.memory_space<vmem>>, vector<8x1xf32>
      tpu.vector_store %arg7[%c0_23, %c0_24], %49 {strides = array<i32>} : memref<8x1xf32, #tpu.memory_space<vmem>>, vector<8x1xf32>,
    } else {
    }
    %c0 = arith.constant 0 : index
    %c0_1 = arith.constant 0 : index
    %3 = vector.load %arg2[%c0, %c0_1] : memref<8x32xf32, #tpu.memory_space<vmem>>, vector<8x32xf32>
    %c0_2 = arith.constant 0 : index
    %c0_3 = arith.constant 0 : index
    %4 = vector.load %arg3[%c0_2, %c0_3] : memref<8x32xf32, #tpu.memory_space<vmem>>, vector<8x32xf32>
    %5 = arith.mulf %3, %3 : vector<8x32xf32>
    %cst = arith.constant dense<0.000000e+00> : vector<8xf32>
    %6 = vector.multi_reduction <add>, %5, %cst [1] : vector<8x32xf32> to vector<8xf32>
    %7 = vector.shape_cast %6 : vector<8xf32> to vector<8x1xf32>
    %cst_4 = arith.constant 1.000000e-16 : f32
    %8 = vector.broadcast %cst_4 : f32 to vector<8x1xf32>
    %9 = arith.maximumf %7, %8 : vector<8x1xf32>
    %10 = math.rsqrt %9 : vector<8x1xf32>
    %11 = vector.broadcast %10 : vector<8x1xf32> to vector<8x32xf32>
    %12 = arith.mulf %3, %11 : vector<8x32xf32>
    %13 = arith.mulf %4, %4 : vector<8x32xf32>
    %cst_5 = arith.constant dense<0.000000e+00> : vector<8xf32>
    %14 = vector.multi_reduction <add>, %13, %cst_5 [1] : vector<8x32xf32> to vector<8xf32>
    %15 = vector.shape_cast %14 : vector<8xf32> to vector<8x1xf32>
    %cst_6 = arith.constant 1.000000e-16 : f32
    %16 = vector.broadcast %cst_6 : f32 to vector<8x1xf32>
    %17 = arith.maximumf %15, %16 : vector<8x1xf32>
    %18 = math.rsqrt %17 : vector<8x1xf32>
    %19 = vector.broadcast %18 : vector<8x1xf32> to vector<8x32xf32>
    %20 = arith.mulf %4, %19 : vector<8x32xf32>
    %cst_7 = arith.constant dense<0.000000e+00> : vector<8x8xf32>
    %21 = tpu.matmul %12, %20, %cst_7 {dimension_numbers = #tpu.dot_dimension_numbers<[1], [1], [0], [0], [0, 0, 1, 0], [], []>} : vector<8x32xf32>, vector<8x32xf32>, vector<8x8xf32> -> vector<8x8xf32>
    %22 = math.exp %21 : vector<8x8xf32>
    %c0_8 = arith.constant 0 : index
    %c0_9 = arith.constant 0 : index
    %23 = vector.load %arg4[%c0_8, %c0_9] : memref<8x1xi32, #tpu.memory_space<vmem>>, vector<8x1xi32>
    %c0_10 = arith.constant 0 : index
    %c0_11 = arith.constant 0 : index
    %24 = vector.load %arg5[%c0_10, %c0_11] : memref<1x8xi32, #tpu.memory_space<vmem>>, vector<1x8xi32>
    %c8_i32 = arith.constant 8 : i32
    %25 = arith.muli %arg1, %c8_i32 : i32
    %26 = tpu.iota {dimensions = array<i32: 1>} : vector<1x8xi32>
    %27 = vector.broadcast %25 : i32 to vector<1x8xi32>
    %28 = arith.addi %27, %26 : vector<1x8xi32>
    %29 = vector.broadcast %23 : vector<8x1xi32> to vector<8x8xi32>
    %30 = vector.broadcast %24 : vector<1x8xi32> to vector<8x8xi32>
    %31 = arith.cmpi ne, %29, %30 : vector<8x8xi32>
    %c8_i32_12 = arith.constant 8 : i32
    %32 = vector.broadcast %c8_i32_12 : i32 to vector<1x8xi32>
    %33 = arith.cmpi slt, %28, %32 : vector<1x8xi32>
    %34 = vector.broadcast %33 : vector<1x8xi1> to vector<8x8xi1>
    %35 = arith.andi %31, %34 : vector<8x8xi1>
    %c0_13 = arith.constant 0 : index
    %c0_14 = arith.constant 0 : index
    %36 = vector.load %arg7[%c0_13, %c0_14] : memref<8x1xf32, #tpu.memory_space<vmem>>, vector<8x1xf32>
    %cst_15 = arith.constant 0.000000e+00 : f32
    %37 = vector.broadcast %cst_15 : f32 to vector<8x8xf32>
    %38 = arith.select %35, %22, %37 : vector<8x8xi1>, vector<8x8xf32>
    %cst_16 = arith.constant dense<0.000000e+00> : vector<8xf32>
    %39 = vector.multi_reduction <add>, %38, %cst_16 [1] : vector<8x8xf32> to vector<8xf32>
    %40 = vector.shape_cast %39 : vector<8xf32> to vector<8x1xf32>
    %41 = arith.addf %36, %40 : vector<8x1xf32>
    %c0_17 = arith.constant 0 : index
    %c0_18 = arith.constant 0 : index
    %42 = vector.load %arg7[%c0_17, %c0_18] : memref<8x1xf32, #tpu.memory_space<vmem>>, vector<8x1xf32>
    tpu.vector_store %arg7[%c0_17, %c0_18], %41 {strides = array<i32>} : memref<8x1xf32, #tpu.memory_space<vmem>>, vector<8x1xf32>,
    %43 = arith.cmpi eq, %arg1, %arg0 : i32
    %44 = arith.extui %43 : i1 to i32
    %c0_i32_19 = arith.constant 0 : i32
    %45 = arith.cmpi ne, %44, %c0_i32_19 : i32
    scf.if %45 {
      %49 = arith.mulf %12, %20 : vector<8x32xf32>
      %cst_22 = arith.constant dense<0.000000e+00> : vector<8xf32>
      %50 = vector.multi_reduction <add>, %49, %cst_22 [1] : vector<8x32xf32> to vector<8xf32>
      %51 = vector.shape_cast %50 : vector<8xf32> to vector<8x1xf32>
      %c0_23 = arith.constant 0 : index
      %c0_24 = arith.constant 0 : index
      %52 = vector.load %arg8[%c0_23, %c0_24] : memref<8x1xf32, #tpu.memory_space<vmem>>, vector<8x1xf32>
      tpu.vector_store %arg8[%c0_23, %c0_24], %51 {strides = array<i32>} : memref<8x1xf32, #tpu.memory_space<vmem>>, vector<8x1xf32>,
    } else {
    }
    %c0_i32_20 = arith.constant 0 : i32
    %46 = arith.cmpi eq, %arg1, %c0_i32_20 : i32
    %47 = arith.extui %46 : i1 to i32
    %c0_i32_21 = arith.constant 0 : i32
    %48 = arith.cmpi ne, %47, %c0_i32_21 : i32
    scf.if %48 {
      %c0_22 = arith.constant 0 : index
      %c0_23 = arith.constant 0 : index
      %49 = vector.load %arg8[%c0_22, %c0_23] : memref<8x1xf32, #tpu.memory_space<vmem>>, vector<8x1xf32>
      %c0_24 = arith.constant 0 : index
      %c0_25 = arith.constant 0 : index
      %50 = vector.load %arg7[%c0_24, %c0_25] : memref<8x1xf32, #tpu.memory_space<vmem>>, vector<8x1xf32>
      %51 = math.log %50 : vector<8x1xf32>
      %52 = arith.subf %49, %51 : vector<8x1xf32>
      %c0_26 = arith.constant 0 : index
      %c0_27 = arith.constant 0 : index
      %53 = vector.load %arg6[%c0_26, %c0_27] : memref<8x1xf32, #tpu.memory_space<vmem>>, vector<8x1xf32>
      tpu.vector_store %arg6[%c0_26, %c0_27], %52 {strides = array<i32>} : memref<8x1xf32, #tpu.memory_space<vmem>>, vector<8x1xf32>,
    } else {
    }
    return
  }
  func.func @transform_0(%arg0: i32, %arg1: i32) -> (i32, i32) {
    %c0_i32 = arith.constant 0 : i32
    %c0_i32_0 = arith.constant 0 : i32
    return %arg0, %c0_i32 : i32, i32
  }
  func.func @transform_1(%arg0: i32, %arg1: i32) -> (i32, i32) {
    %c0_i32 = arith.constant 0 : i32
    %c0_i32_0 = arith.constant 0 : i32
    return %arg1, %c0_i32 : i32, i32
  }
  func.func @transform_2(%arg0: i32, %arg1: i32) -> (i32, i32) {
    %c0_i32 = arith.constant 0 : i32
    %c0_i32_0 = arith.constant 0 : i32
    return %arg0, %c0_i32 : i32, i32
  }
  func.func @transform_3(%arg0: i32, %arg1: i32) -> (i32, i32) {
    %c0_i32 = arith.constant 0 : i32
    %c0_i32_0 = arith.constant 0 : i32
    return %c0_i32, %arg1 : i32, i32
  }
  func.func @transform_4(%arg0: i32, %arg1: i32) -> (i32, i32) {
    %c0_i32 = arith.constant 0 : i32
    %c0_i32_0 = arith.constant 0 : i32
    return %arg0, %c0_i32 : i32, i32
  }
}

</mosaic_0001>

<llo_original>
// kernel: tpu_custom_call.1
$region0: #{tpu_custom_call.1}
  #allocation0 [shape = 'u32[]', space=smem, size = 0x4, offset = 0x4, fixed_abs, tag = 'smem constant byte address 0x4 - core index']
  #allocation1 [shape = 'u32[144,128]{1,0:T(1,128)}', space=vmem, size = 0x12000, scoped, tag = 'internal scratch']
  #allocation2 [shape = 'f32[8,1]{1,0:T(8,128)}', space=vmem, size = 0x1000, scoped, tag = 'scratch operand']
  #allocation3 [shape = 'f32[8,1]{1,0:T(8,128)}', space=vmem, size = 0x1000, scoped, tag = 'scratch operand']
  %s0 = inlined_call_operand.vmem [shape: f32[8,32], index: 0, kind: input, shape index: {}]
  %s1 = inlined_call_operand.hbm [shape: f32[8,32], index: 1, kind: input, shape index: {}]
  %s2 = inlined_call_operand.vmem [shape: s32[8,1], index: 2, kind: input, shape index: {}]
  %s3 = inlined_call_operand.vmem [shape: s32[1,8], index: 3, kind: input, shape index: {}]
  %s4 = inlined_call_operand.vmem [shape: f32[8,1], index: 4, kind: output, shape index: {}]
  %s5 = sld [smem:[#allocation0]]
  $region42: #{tpu_custom_call.1} parent=0
    _
  %s7 = ssub.s32 1, %s5
  %s8 = scalar_select 0, %s7, %s5
  $region1: #{tpu_custom_call.1} parent=0
    #allocation4 [shape = 'u8[4096]{0}', space=vmem, size = 0x1000, scoped, tag = 'input window, operand 1, single buffered']
    #allocation5 [shape = 's32[1]{0}', space=sflag, size = 0x4, scoped, tag = 'scoped memory for tpu_custom_call.1']
    %9 = vsyncpa [#allocation5], 0
    // Predicated region
    $region2: #{tpu_custom_call.1} parent=1 // pred_check
      _
    $region3: #{tpu_custom_call.1} parent=1 // pred_check_branch
      %11 = sbr.rel (0) target = $region5
    $region4: #{tpu_custom_call.1} parent=1 // pred_region
      _
    $region5: #{tpu_custom_call.1} parent=1 // pred_fallthru
      _
    // Predicated region
    $region6: #{tpu_custom_call.1} parent=1 // pred_check
      _
    $region7: #{tpu_custom_call.1} parent=1 // pred_check_branch
      %13 = sbr.rel (0) target = $region9
    $region8: #{tpu_custom_call.1} parent=1 // pred_region
      %s15 = ssub.s32 128, 128
      %16 = vsyncadd [#allocation5], %s15
      %s18 = sshll.u32 [#allocation4], 4
      %s19 = int_to_ptr.vmem [resolvable:$true] %s18
      %21 = dma.hbm_to_vmem [thread:$0]  %s1, 128, %s19, [#allocation5]
    $region9: #{tpu_custom_call.1} parent=1 // pred_fallthru
      _
    // Predicated region
    $region10: #{tpu_custom_call.1} parent=1 // pred_check
      _
    $region11: #{tpu_custom_call.1} parent=1 // pred_check_branch
      %23 = sbr.rel (0) target = $region13
    $region12: #{tpu_custom_call.1} parent=1 // pred_region
      _
    $region13: #{tpu_custom_call.1} parent=1 // pred_fallthru
      _
    // Predicated region
    $region14: #{tpu_custom_call.1} parent=1 // pred_check
      _
    $region15: #{tpu_custom_call.1} parent=1 // pred_check_branch
      %25 = sbr.rel (0) target = $region17
    $region16: #{tpu_custom_call.1} parent=1 // pred_region
      _
    $region17: #{tpu_custom_call.1} parent=1 // pred_fallthru
      _
    // Predicated region
    $region18: #{tpu_custom_call.1} parent=1 // pred_check
      _
    $region19: #{tpu_custom_call.1} parent=1 // pred_check_branch
      %27 = sbr.rel (0) target = $region21
    $region20: #{tpu_custom_call.1} parent=1 // pred_region
      %28 = dma.done [#allocation5], 128
    $region21: #{tpu_custom_call.1} parent=1 // pred_fallthru
      _
    %p29 = scmp.eq.s32.totalorder 0, 0
    // Predicated region
    $region22: #{tpu_custom_call.1} parent=1 // pred_check
      %p30 = pneg %p29
    $region23: #{tpu_custom_call.1} parent=1 // pred_check_branch
      %32 = sbr.rel (%p30) target = $region25
    $region24: #{tpu_custom_call.1} parent=1 // pred_region
      %vm33 = vcmask 7168
      %34 = vst.msk [vmem:[#allocation2] sm:$0xff] %vm33, 0.0
    $region25: #{tpu_custom_call.1} parent=1 // pred_fallthru
      _
    %v35 = vld [vmem:[%s0] sm:$0xff]
    %v36 = vld [vmem:[#allocation4] sm:$0xff]
    %v37 = vmul.f32 %v35, %v35
    %vm38 = vcmask 261120
    %v39 = vsel %vm38, %v37, 0.0
    %40 = vadd.xlane.f32.xlu0 %v39
    %v41 = vpop.xlane.xlu0 %40
    %v42 = vmax.f32 %v41, 1e-16
    %v43 = vrsqrt.pop %v42
    %v44 = vmul.f32 %v35, %v43
    %v45 = vmul.f32 %v36, %v36
    %v46 = vsel %vm38, %v45, 0.0
    %47 = vadd.xlane.f32.xlu0 %v46
    %v48 = vpop.xlane.xlu0 %47
    %v49 = vmax.f32 %v48, 1e-16
    %v50 = vrsqrt.pop %v49
    %v51 = vmul.f32 %v36, %v50
    %v53 = vsel %vm38, %v44, 0
    %v56 = vsel %vm38, %v51, 0
    %58 = vmatprep.subr.mxu0 0.0
    %59 = vmatpush1.xpose.msra.mxu0 0.0
    %60 = vmatprep.subr.mxu0 0.0
    %61 = vmatpush1.xpose.msra.mxu0 0.0
    %62 = vmatprep.subr.mxu0 0.0
    %63 = vmatpush1.xpose.msra.mxu0 0.0
    %64 = vmatprep.subr.mxu0 0.0
    %65 = vmatpush1.xpose.msra.mxu0 0.0
    %66 = vmatprep.subr.mxu0 0.0
    %67 = vmatpush1.xpose.msra.mxu0 0.0
    %68 = vmatprep.subr.mxu0 0.0
    %69 = vmatpush1.xpose.msra.mxu0 0.0
    %70 = vmatprep.subr.mxu0 0.0
    %71 = vmatpush1.xpose.msra.mxu0 0.0
    %72 = vmatprep.subr.mxu0 0.0
    %73 = vmatpush1.xpose.msra.mxu0 0.0
    %74 = vmatprep.subr.mxu0 0.0
    %75 = vmatpush1.xpose.msra.mxu0 0.0
    %76 = vmatprep.subr.mxu0 0.0
    %77 = vmatpush1.xpose.msra.mxu0 0.0
    %78 = vmatprep.subr.mxu0 0.0
    %79 = vmatpush1.xpose.msra.mxu0 0.0
    %80 = vmatprep.subr.mxu0 0.0
    %81 = vmatpush1.xpose.msra.mxu0 0.0
    %82 = vmatprep.subr.mxu0 0.0
    %83 = vmatpush1.xpose.msra.mxu0 0.0
    %84 = vmatprep.subr.mxu0 0.0
    %85 = vmatpush1.xpose.msra.mxu0 0.0
    %86 = vmatprep.subr.mxu0 0.0
    %87 = vmatpush1.xpose.msra.mxu0 0.0
    %88 = vmatprep.subr.mxu0 0.0
    %89 = vmatpush1.xpose.msra.mxu0 %v56
    %90 = vmatprep.subr.mxu0 0.0
    %91 = vmatpush2.xpose.msra.mxu0 0.0
    %92 = vmatprep.subr.mxu0 0.0
    %93 = vmatpush2.xpose.msra.mxu0 0.0
    %94 = vmatprep.subr.mxu0 0.0
    %95 = vmatpush2.xpose.msra.mxu0 0.0
    %96 = vmatprep.subr.mxu0 0.0
    %97 = vmatpush2.xpose.msra.mxu0 0.0
    %98 = vmatprep.subr.mxu0 0.0
    %99 = vmatpush2.xpose.msra.mxu0 0.0
    %100 = vmatprep.subr.mxu0 0.0
    %101 = vmatpush2.xpose.msra.mxu0 0.0
    %102 = vmatprep.subr.mxu0 0.0
    %103 = vmatpush2.xpose.msra.mxu0 0.0
    %104 = vmatprep.subr.mxu0 0.0
    %105 = vmatpush2.xpose.msra.mxu0 0.0
    %106 = vmatprep.subr.mxu0 0.0
    %107 = vmatpush2.xpose.msra.mxu0 0.0
    %108 = vmatprep.subr.mxu0 0.0
    %109 = vmatpush2.xpose.msra.mxu0 0.0
    %110 = vmatprep.subr.mxu0 0.0
    %111 = vmatpush2.xpose.msra.mxu0 0.0
    %112 = vmatprep.subr.mxu0 0.0
    %113 = vmatpush2.xpose.msra.mxu0 0.0
    %114 = vmatprep.subr.mxu0 0.0
    %115 = vmatpush2.xpose.msra.mxu0 0.0
    %116 = vmatprep.subr.mxu0 0.0
    %117 = vmatpush2.xpose.msra.mxu0 0.0
    %118 = vmatprep.subr.mxu0 0.0
    %119 = vmatpush2.xpose.msra.mxu0 0.0
    %120 = vmatprep.subr.mxu0 0.0
    %121 = vmatpush2.xpose.msra.mxu0 0.0
    %122 = vmatprep.mubr.f32.mxu0 0.0
    %123 = vmatmul.mubr.f32.gmra.mxu0 %v53
    %v124 = vpop.f32.mrf.mxu0
    %v125 = vadd.f32 0.0, %v124
    %v126 = vpop.f32.mrf.mxu0
    %127 = vdwg.mxu0
    %v128 = vmul.f32 %v125, 1.442695
    %v129 = vpow.pop %v128
    %v130 = vld [vmem:[%s2] sm:$0xff]
    %v131 = vld [vmem:[%s3] sm:$0x1]
    %s132 = smul.u32 0, 8
    %v133 = vlaneseq
    %v134 = vand.u32 %v133, 127
    %v135 = vstv %s132
    %v136 = vadd.s32 %v135, %v134
    %137 = vset.pattern.permute.xlu0 0
    %138 = vperm.xlu0 %137, %v130
    %v139 = vpop.permute.xlu0 %138
    %v140 = vlaneseq
    %v141 = vshrl.u32 %v140, 7
    %v142 = vsub.s32 0, %v141
    %v143 = vrot.slane %v131, %v142
    %vm144 = vcmp.ne.s32.totalorder %v139, %v143
    %vm145 = vcmp.lt.s32.totalorder %v136, 8
    %v146 = vsel %vm145, 1, 0
    %vm147 = vcmp.eq.s32.totalorder %v146, 1
    %vm148 = vmand %vm144, %vm147
    %v149 = vld [vmem:[#allocation2] sm:$0xff]
    %v150 = vsel %vm148, %v129, 0.0
    %vm151 = vcmask 64512
    %v152 = vsel %vm151, %v150, 0.0
    %153 = vadd.xlane.f32.xlu0 %v152
    %v154 = vpop.xlane.xlu0 %153
    %v155 = vadd.f32 %v149, %v154
    %vm156 = vcmask 7168
    %157 = vst.msk [vmem:[#allocation2] sm:$0xff] %vm156, %v155
    %p158 = scmp.eq.s32.totalorder 0, 0
    // Predicated region
    $region26: #{tpu_custom_call.1} parent=1 // pred_check
      %p159 = pneg %p158
    $region27: #{tpu_custom_call.1} parent=1 // pred_check_branch
      %161 = sbr.rel (%p159) target = $region29
    $region28: #{tpu_custom_call.1} parent=1 // pred_region
      %v162 = vmul.f32 %v44, %v51
      %v163 = vsel %vm38, %v162, 0.0
      %164 = vadd.xlane.f32.xlu0 %v163
      %v165 = vpop.xlane.xlu0 %164
      %166 = vst.msk [vmem:[#allocation3] sm:$0xff] %vm156, %v165
    $region29: #{tpu_custom_call.1} parent=1 // pred_fallthru
      _
    // Predicated region
    $region30: #{tpu_custom_call.1} parent=1 // pred_check
      %p167 = pneg %p29
    $region31: #{tpu_custom_call.1} parent=1 // pred_check_branch
      %169 = sbr.rel (%p167) target = $region33
    $region32: #{tpu_custom_call.1} parent=1 // pred_region
      %v170 = vld [vmem:[#allocation3] sm:$0xff]
      %v171 = vld [vmem:[#allocation2] sm:$0xff]
      %v172 = vlog2.pop %v171
      %v173 = vmul.f32 %v172, 0.6931472
      %v174 = vsub.f32 %v170, %v173
      %175 = vst.msk [vmem:[%s4] sm:$0xff] %vm156, %v174
    $region33: #{tpu_custom_call.1} parent=1 // pred_fallthru
      _
    // Predicated region
    $region34: #{tpu_custom_call.1} parent=1 // pred_check
      _
    $region35: #{tpu_custom_call.1} parent=1 // pred_check_branch
      %177 = sbr.rel (0) target = $region37
    $region36: #{tpu_custom_call.1} parent=1 // pred_region
      _
    $region37: #{tpu_custom_call.1} parent=1 // pred_fallthru
      _
    // Predicated region
    $region38: #{tpu_custom_call.1} parent=1 // pred_check
      _
    $region39: #{tpu_custom_call.1} parent=1 // pred_check_branch
      %179 = sbr.rel (0) target = $region41
    $region40: #{tpu_custom_call.1} parent=1 // pred_region
      _
    $region41: #{tpu_custom_call.1} parent=1 // pred_fallthru
      _
    %180 = vsyncpa [#allocation5], 1

</llo_original>
